<compile_context>
chip_gen: v7x
topology: tpu7x:2x2x1
jax: 0.10.0
libtpu: 0.0.40
codegen_flags: <defaults>
</compile_context>

<pallas_src>
import functools

import jax
import jax.numpy as jnp
from jax import lax
from jax.experimental import pallas as pl
from jax.experimental.pallas import tpu as pltpu

_NEG_PAD = -1e30  # mask value for non-class columns -> exp() underflows to 0


def _round_up(x, m):
    return ((x + m - 1) // m) * m


def mlp_d_kernel(x_ref, att_ref,
                 w1x_ref, w1a_ref, b1_ref,
                 w3c_ref, b3c_ref,
                 pred1_ref, pred2_ref,
                 *, nclass):
    # Activations cast to bf16 for the MXU; accumulation stays f32.
    x = x_ref[...].astype(jnp.bfloat16)
    att = att_ref[...].astype(jnp.bfloat16)

    # fc1 with fused concat: cat((x, att), 1) @ W1^T == x @ W1x + att @ W1a
    z1 = (jnp.dot(x, w1x_ref[...], preferred_element_type=jnp.float32)
          + jnp.dot(att, w1a_ref[...], preferred_element_type=jnp.float32)
          + b1_ref[...])
    h = jnp.maximum(z1, 0.2 * z1)                       # LeakyReLU(0.2), f32

    # Combined fc3|fc2 matmul: columns [0:nclass] are fc3 logits, column
    # `nclass` is the fc2 output, remaining columns are zero-weight padding.
    z = (jnp.dot(h.astype(jnp.bfloat16), w3c_ref[...],
                 preferred_element_type=jnp.float32)
         + b3c_ref[...])

    # pred1: broadcast the fc2 column across the lane-padded output so the
    # store stays lane-dense; wrapper keeps column 0 only.
    pred1_col = z[:, nclass:nclass + 1]
    pred1_ref[...] = jnp.broadcast_to(
        pred1_col, pred1_ref.shape).astype(pred1_ref.dtype)

    # pred2: LogSoftmax over the real class columns only (mask fc2 + padding).
    col = lax.broadcasted_iota(jnp.int32, z.shape, dimension=1)
    logits = jnp.where(col < nclass, z, _NEG_PAD)
    m = jnp.max(logits, axis=1, keepdims=True)
    lse = m + jnp.log(jnp.sum(jnp.exp(logits - m), axis=1, keepdims=True))
    pred2_ref[...] = (logits - lse).astype(pred2_ref.dtype)


def init_params(key, res_size, att_size, ndh, nclass_all):
    """weights_init: Linear weight ~ N(0, 0.02), bias = 0 (PyTorch layout)."""
    in_dim = res_size + att_size
    k1, k2, k3 = jax.random.split(key, 3)
    w1 = 0.02 * jax.random.normal(k1, (ndh, in_dim), dtype=jnp.float32)
    b1 = jnp.zeros((ndh,), dtype=jnp.float32)
    w2 = 0.02 * jax.random.normal(k2, (1, ndh), dtype=jnp.float32)
    b2 = jnp.zeros((1,), dtype=jnp.float32)
    w3 = 0.02 * jax.random.normal(k3, (nclass_all, ndh), dtype=jnp.float32)
    b3 = jnp.zeros((nclass_all,), dtype=jnp.float32)
    return w1, b1, w2, b2, w3, b3


def prepare_params(w1, b1, w2, b2, w3, b3, res_size, att_size,
                   *, lane_multiple=128, weight_dtype=jnp.bfloat16):
    """One-time weight prep: transpose, split W1 for the fused concat, fold
    fc2 into fc3's padding column, lane-pad, and down-cast weights to bf16.
    Biases stay f32 (also keeps the -1e30-style masking numerically safe)."""
    ndh, in_dim = w1.shape
    assert in_dim == res_size + att_size
    nclass = w3.shape[0]

    ndh_p = _round_up(ndh, lane_multiple)        # fc1 out / fc3 contraction
    nc_p = _round_up(nclass + 1, lane_multiple)  # classes + fused fc2 column
    p1_p = 128                                   # pred1 lane width

    w1_t = jnp.transpose(w1)                     # (in_dim, ndh)
    w1x = (jnp.zeros((res_size, ndh_p), jnp.float32)
           .at[:, :ndh].set(w1_t[:res_size]).astype(weight_dtype))
    w1a = (jnp.zeros((att_size, ndh_p), jnp.float32)
           .at[:, :ndh].set(w1_t[res_size:]).astype(weight_dtype))
    b1p = jnp.zeros((1, ndh_p), jnp.float32).at[:, :ndh].set(b1)

    # Combined fc3|fc2 weight: fc3 in cols [0:nclass], fc2 in col nclass.
    w3c = jnp.zeros((ndh_p, nc_p), jnp.float32)
    w3c = w3c.at[:ndh, :nclass].set(jnp.transpose(w3))
    w3c = w3c.at[:ndh, nclass:nclass + 1].set(jnp.transpose(w2))
    w3c = w3c.astype(weight_dtype)
    b3c = jnp.zeros((1, nc_p), jnp.float32)
    b3c = b3c.at[:, :nclass].set(b3)
    b3c = b3c.at[:, nclass:nclass + 1].set(b2)

    return {
        "w1x": w1x, "w1a": w1a, "b1": b1p,
        "w3c": w3c, "b3c": b3c,
        "nclass": nclass, "ndh_p": ndh_p, "nc_p": nc_p, "p1_p": p1_p,
    }


def mlp_d_forward(x, att, params, *, batch_tile=8):
    """Returns (pred1 (B,1), pred2 (B,nclass_all)) matching MLP_D.forward."""
    assert batch_tile % 8 == 0, "batch tile must be a sublane multiple"
    B, res_size = x.shape
    att_size = att.shape[1]
    ndh_p = params["ndh_p"]
    nc_p = params["nc_p"]
    p1_p = params["p1_p"]
    nclass = params["nclass"]

    # Pad batch to a multiple of the batch tile (padded rows sliced off below).
    B_p = _round_up(max(B, batch_tile), batch_tile)
    if B_p != B:
        x = jnp.zeros((B_p, res_size), x.dtype).at[:B].set(x)
        att = jnp.zeros((B_p, att_size), att.dtype).at[:B].set(att)
    grid = (B_p // batch_tile,)

    vmem = pltpu.MemorySpace.VMEM
    # Per-batch-tile blocks (activations / outputs) follow the grid index.
    row = lambda d: pl.BlockSpec((batch_tile, d), lambda i: (i, 0),
                                 memory_space=vmem)
    # Weights/biases: constant index_map -> fetched once, resident over grid.
    resident = lambda shape: pl.BlockSpec(shape, lambda i: (0, 0),
                                          memory_space=vmem)

    in_dim = res_size + att_size
    flops = 2 * B_p * (in_dim * ndh_p + ndh_p * nc_p)
    bytes_accessed = (
        4 * B_p * (res_size + att_size)                       # f32 activations
        + 2 * (in_dim * ndh_p + ndh_p * nc_p)                 # bf16 weights
        + 4 * (ndh_p + nc_p)                                  # f32 biases
        + 4 * B_p * (p1_p + nc_p))                            # f32 outputs
    cost = pl.CostEstimate(flops=flops,
                           transcendentals=B_p * (nc_p + 1),
                           bytes_accessed=bytes_accessed)

    kernel = functools.partial(mlp_d_kernel, nclass=nclass)

    pred1_p, pred2_p = pl.pallas_call(
        kernel,
        out_shape=(
            jax.ShapeDtypeStruct((B_p, p1_p), jnp.float32),
            jax.ShapeDtypeStruct((B_p, nc_p), jnp.float32),
        ),
        grid=grid,
        in_specs=[
            row(res_size),                 # x
            row(att_size),                 # att
            resident((res_size, ndh_p)),   # w1x (bf16)
            resident((att_size, ndh_p)),   # w1a (bf16)
            resident((1, ndh_p)),          # b1  (f32)
            resident((ndh_p, nc_p)),       # w3c (bf16, fc3|fc2 fused)
            resident((1, nc_p)),           # b3c (f32)
        ],
        out_specs=(
            row(p1_p),
            row(nc_p),
        ),
        compiler_params=pltpu.CompilerParams(
            dimension_semantics=("parallel",),   # shard batch tiles over TCs
            vmem_limit_bytes=32 * 1024 * 1024,
        ),
        cost_estimate=cost,
    )(x, att, params["w1x"], params["w1a"], params["b1"],
      params["w3c"], params["b3c"])

    return pred1_p[:B, :1], pred2_p[:B, :nclass]


if __name__ == "__main__":
    # Small, forward-consistent shapes (batch chosen so the grid has >1 step).
    batch = 20
    res_size = 16
    att_size = 8
    ndh = 32
    nclass_all = 10

    key = jax.random.PRNGKey(0)
    kp, kx, ka = jax.random.split(key, 3)

    w1, b1, w2, b2, w3, b3 = init_params(kp, res_size, att_size, ndh, nclass_all)
    params = prepare_params(w1, b1, w2, b2, w3, b3, res_size, att_size)

    x = jax.random.normal(kx, (batch, res_size), dtype=jnp.float32)
    att = jax.random.normal(ka, (batch, att_size), dtype=jnp.float32)

    pred1, pred2 = mlp_d_forward(x, att, params)
    jax.block_until_ready((pred1, pred2))

    # Pure-JAX f32 reference (same math as the PyTorch module).
    h_ref = jnp.concatenate((x, att), axis=1)
    z1 = h_ref @ w1.T + b1
    a1 = jnp.where(z1 > 0, z1, 0.2 * z1)
    ref1 = a1 @ w2.T + b2
    ref2 = jax.nn.log_softmax(a1 @ w3.T + b3, axis=1)

    assert pred1.shape == (batch, 1)
    assert pred2.shape == (batch, nclass_all)
    # Tolerance loosened vs. the all-f32 version because weights/activations
    # now run through the MXU in bf16 (f32 accumulation).
    assert jnp.allclose(pred1, ref1, atol=1e-2, rtol=1e-2), "pred1 mismatch"
    assert jnp.allclose(pred2, ref2, atol=1e-2, rtol=1e-2), "pred2 mismatch"

    print("KERNEL_OK")
</pallas_src>

<mosaic_0001>
module attributes {stable_mosaic.version = 11 : i64} {
  func.func @mlp_d_kernel(%arg0: i32, %arg1: memref<8x16xf32, #tpu.memory_space<vmem>>, %arg2: memref<8x8xf32, #tpu.memory_space<vmem>>, %arg3: memref<16x128xbf16, #tpu.memory_space<vmem>>, %arg4: memref<8x128xbf16, #tpu.memory_space<vmem>>, %arg5: memref<1x128xf32, #tpu.memory_space<vmem>>, %arg6: memref<128x128xbf16, #tpu.memory_space<vmem>>, %arg7: memref<1x128xf32, #tpu.memory_space<vmem>>, %arg8: memref<8x128xf32, #tpu.memory_space<vmem>>, %arg9: memref<8x128xf32, #tpu.memory_space<vmem>>) attributes {dimension_semantics = [#tpu.dimension_semantics<parallel>], iteration_bounds = array<i64: 3>, scalar_prefetch = 0 : i64, scratch_operands = 0 : i64, tpu.core_type = #tpu.core_type<tc>, window_params = [{transform_indices = @transform_0, window_bounds = array<i64: 8, 16>}, {transform_indices = @transform_1, window_bounds = array<i64: 8, 8>}, {pipeline_mode = #tpu.pipeline_mode<synchronous>, transform_indices = @transform_2, window_bounds = array<i64: 16, 128>}, {pipeline_mode = #tpu.pipeline_mode<synchronous>, transform_indices = @transform_3, window_bounds = array<i64: 8, 128>}, {pipeline_mode = #tpu.pipeline_mode<synchronous>, transform_indices = @transform_4, window_bounds = array<i64: 1, 128>}, {pipeline_mode = #tpu.pipeline_mode<synchronous>, transform_indices = @transform_5, window_bounds = array<i64: 128, 128>}, {pipeline_mode = #tpu.pipeline_mode<synchronous>, transform_indices = @transform_6, window_bounds = array<i64: 1, 128>}, {transform_indices = @transform_7, window_bounds = array<i64: 8, 128>}, {transform_indices = @transform_8, window_bounds = array<i64: 8, 128>}]} {
    %c0 = arith.constant 0 : index
    %c0_0 = arith.constant 0 : index
    %0 = vector.load %arg1[%c0, %c0_0] : memref<8x16xf32, #tpu.memory_space<vmem>>, vector<8x16xf32>
    %1 = arith.truncf %0 : vector<8x16xf32> to vector<8x16xbf16>
    %c0_1 = arith.constant 0 : index
    %c0_2 = arith.constant 0 : index
    %2 = vector.load %arg2[%c0_1, %c0_2] : memref<8x8xf32, #tpu.memory_space<vmem>>, vector<8x8xf32>
    %3 = arith.truncf %2 : vector<8x8xf32> to vector<8x8xbf16>
    %c0_3 = arith.constant 0 : index
    %c0_4 = arith.constant 0 : index
    %4 = vector.load %arg3[%c0_3, %c0_4] : memref<16x128xbf16, #tpu.memory_space<vmem>>, vector<16x128xbf16>
    %cst = arith.constant dense<0.000000e+00> : vector<8x128xf32>
    %5 = tpu.matmul %1, %4, %cst {dimension_numbers = #tpu.dot_dimension_numbers<[1], [0], [0], [1], [0, 0, 1, 1], [], []>} : vector<8x16xbf16>, vector<16x128xbf16>, vector<8x128xf32> -> vector<8x128xf32>
    %c0_5 = arith.constant 0 : index
    %c0_6 = arith.constant 0 : index
    %6 = vector.load %arg4[%c0_5, %c0_6] : memref<8x128xbf16, #tpu.memory_space<vmem>>, vector<8x128xbf16>
    %cst_7 = arith.constant dense<0.000000e+00> : vector<8x128xf32>
    %7 = tpu.matmul %3, %6, %cst_7 {dimension_numbers = #tpu.dot_dimension_numbers<[1], [0], [0], [1], [0, 0, 1, 1], [], []>} : vector<8x8xbf16>, vector<8x128xbf16>, vector<8x128xf32> -> vector<8x128xf32>
    %8 = arith.addf %5, %7 : vector<8x128xf32>
    %c0_8 = arith.constant 0 : index
    %c0_9 = arith.constant 0 : index
    %9 = vector.load %arg5[%c0_8, %c0_9] : memref<1x128xf32, #tpu.memory_space<vmem>>, vector<1x128xf32>
    %10 = vector.broadcast %9 : vector<1x128xf32> to vector<8x128xf32>
    %11 = arith.addf %8, %10 : vector<8x128xf32>
    %cst_10 = arith.constant 2.000000e-01 : f32
    %12 = vector.broadcast %cst_10 : f32 to vector<8x128xf32>
    %13 = arith.mulf %12, %11 : vector<8x128xf32>
    %14 = arith.maximumf %11, %13 : vector<8x128xf32>
    %15 = arith.truncf %14 : vector<8x128xf32> to vector<8x128xbf16>
    %c0_11 = arith.constant 0 : index
    %c0_12 = arith.constant 0 : index
    %16 = vector.load %arg6[%c0_11, %c0_12] : memref<128x128xbf16, #tpu.memory_space<vmem>>, vector<128x128xbf16>
    %cst_13 = arith.constant dense<0.000000e+00> : vector<8x128xf32>
    %17 = tpu.matmul %15, %16, %cst_13 {dimension_numbers = #tpu.dot_dimension_numbers<[1], [0], [0], [1], [0, 0, 1, 1], [], []>} : vector<8x128xbf16>, vector<128x128xbf16>, vector<8x128xf32> -> vector<8x128xf32>
    %c0_14 = arith.constant 0 : index
    %c0_15 = arith.constant 0 : index
    %18 = vector.load %arg7[%c0_14, %c0_15] : memref<1x128xf32, #tpu.memory_space<vmem>>, vector<1x128xf32>
    %19 = vector.broadcast %18 : vector<1x128xf32> to vector<8x128xf32>
    %20 = arith.addf %17, %19 : vector<8x128xf32>
    %21 = vector.extract_strided_slice %20 {offsets = [0, 10], sizes = [8, 1], strides = [1, 1]} : vector<8x128xf32> to vector<8x1xf32>
    %22 = vector.shape_cast %21 : vector<8x1xf32> to vector<8x1xf32>
    %23 = vector.broadcast %22 : vector<8x1xf32> to vector<8x128xf32>
    %c0_16 = arith.constant 0 : index
    %c0_17 = arith.constant 0 : index
    %24 = vector.load %arg8[%c0_16, %c0_17] : memref<8x128xf32, #tpu.memory_space<vmem>>, vector<8x128xf32>
    tpu.vector_store %arg8[%c0_16, %c0_17], %23 {strides = array<i32>} : memref<8x128xf32, #tpu.memory_space<vmem>>, vector<8x128xf32>,
    %25 = tpu.iota {dimensions = array<i32: 1>} : vector<8x128xi32>
    %c10_i32 = arith.constant 10 : i32
    %26 = vector.broadcast %c10_i32 : i32 to vector<8x128xi32>
    %27 = arith.cmpi slt, %25, %26 : vector<8x128xi32>
    %cst_18 = arith.constant -1.000000e+30 : f32
    %28 = vector.broadcast %cst_18 : f32 to vector<8x128xf32>
    %29 = arith.select %27, %20, %28 : vector<8x128xi1>, vector<8x128xf32>
    %cst_19 = arith.constant dense<0xFF800000> : vector<8xf32>
    %30 = vector.multi_reduction <maximumf>, %29, %cst_19 [1] : vector<8x128xf32> to vector<8xf32>
    %31 = vector.shape_cast %30 : vector<8xf32> to vector<8x1xf32>
    %32 = vector.broadcast %31 : vector<8x1xf32> to vector<8x128xf32>
    %33 = arith.subf %29, %32 : vector<8x128xf32>
    %34 = math.exp %33 : vector<8x128xf32>
    %cst_20 = arith.constant dense<0.000000e+00> : vector<8xf32>
    %35 = vector.multi_reduction <add>, %34, %cst_20 [1] : vector<8x128xf32> to vector<8xf32>
    %36 = vector.shape_cast %35 : vector<8xf32> to vector<8x1xf32>
    %37 = math.log %36 : vector<8x1xf32>
    %38 = arith.addf %31, %37 : vector<8x1xf32>
    %39 = vector.broadcast %38 : vector<8x1xf32> to vector<8x128xf32>
    %40 = arith.subf %29, %39 : vector<8x128xf32>
    %c0_21 = arith.constant 0 : index
    %c0_22 = arith.constant 0 : index
    %41 = vector.load %arg9[%c0_21, %c0_22] : memref<8x128xf32, #tpu.memory_space<vmem>>, vector<8x128xf32>
    tpu.vector_store %arg9[%c0_21, %c0_22], %40 {strides = array<i32>} : memref<8x128xf32, #tpu.memory_space<vmem>>, vector<8x128xf32>,
    return
  }
  func.func @transform_0(%arg0: i32) -> (i32, i32) {
    %c0_i32 = arith.constant 0 : i32
    %c0_i32_0 = arith.constant 0 : i32
    return %arg0, %c0_i32 : i32, i32
  }
  func.func @transform_1(%arg0: i32) -> (i32, i32) {
    %c0_i32 = arith.constant 0 : i32
    %c0_i32_0 = arith.constant 0 : i32
    return %arg0, %c0_i32 : i32, i32
  }
  func.func @transform_2(%arg0: i32) -> (i32, i32) {
    %c0_i32 = arith.constant 0 : i32
    %c0_i32_0 = arith.constant 0 : i32
    %c0_i32_1 = arith.constant 0 : i32
    return %c0_i32, %c0_i32_0 : i32, i32
  }
  func.func @transform_3(%arg0: i32) -> (i32, i32) {
    %c0_i32 = arith.constant 0 : i32
    %c0_i32_0 = arith.constant 0 : i32
    %c0_i32_1 = arith.constant 0 : i32
    return %c0_i32, %c0_i32_0 : i32, i32
  }
  func.func @transform_4(%arg0: i32) -> (i32, i32) {
    %c0_i32 = arith.constant 0 : i32
    %c0_i32_0 = arith.constant 0 : i32
    %c0_i32_1 = arith.constant 0 : i32
    return %c0_i32, %c0_i32_0 : i32, i32
  }
  func.func @transform_5(%arg0: i32) -> (i32, i32) {
    %c0_i32 = arith.constant 0 : i32
    %c0_i32_0 = arith.constant 0 : i32
    %c0_i32_1 = arith.constant 0 : i32
    return %c0_i32, %c0_i32_0 : i32, i32
  }
  func.func @transform_6(%arg0: i32) -> (i32, i32) {
    %c0_i32 = arith.constant 0 : i32
    %c0_i32_0 = arith.constant 0 : i32
    %c0_i32_1 = arith.constant 0 : i32
    return %c0_i32, %c0_i32_0 : i32, i32
  }
  func.func @transform_7(%arg0: i32) -> (i32, i32) {
    %c0_i32 = arith.constant 0 : i32
    %c0_i32_0 = arith.constant 0 : i32
    return %arg0, %c0_i32 : i32, i32
  }
  func.func @transform_8(%arg0: i32) -> (i32, i32) {
    %c0_i32 = arith.constant 0 : i32
    %c0_i32_0 = arith.constant 0 : i32
    return %arg0, %c0_i32 : i32, i32
  }
}

</mosaic_0001>

<llo_original>
// kernel: tpu_custom_call.1
$region0: #{tpu_custom_call.1}
  #allocation0 [shape = 'u32[]', space=smem, size = 0x4, offset = 0x4, fixed_abs, tag = 'smem constant byte address 0x4 - core index']
  #allocation1 [shape = 'u32[144,128]{1,0:T(1,128)}', space=vmem, size = 0x12000, scoped, tag = 'internal scratch']
  %s0 = inlined_call_operand.vmem [shape: f32[24,16], index: 0, kind: input, shape index: {}]
  %s1 = inlined_call_operand.vmem [shape: f32[24,8], index: 1, kind: input, shape index: {}]
  %s2 = inlined_call_operand.vmem [shape: bf16[16,128], index: 2, kind: input, shape index: {}]
  %s3 = inlined_call_operand.vmem [shape: bf16[8,128], index: 3, kind: input, shape index: {}]
  %s4 = inlined_call_operand.vmem [shape: f32[1,128], index: 4, kind: input, shape index: {}]
  %s5 = inlined_call_operand.vmem [shape: bf16[128,128], index: 5, kind: input, shape index: {}]
  %s6 = inlined_call_operand.vmem [shape: f32[1,128], index: 6, kind: input, shape index: {}]
  %s7 = inlined_call_operand.hbm [shape: f32[24,128], index: 7, kind: output, shape index: {0}]
  %s8 = inlined_call_operand.hbm [shape: f32[24,128], index: 8, kind: output, shape index: {1}]
  %9 = xla_tuple %s7, %s8
  %s10 = sld [smem:[#allocation0]]
  $region69: #{tpu_custom_call.1} parent=0
    _
  %s12 = ssub.s32 1, %s10
  %s13 = scalar_select 0, %s12, %s10
  $region1: #{tpu_custom_call.1} parent=0
    #allocation2 [shape = 'u8[8192]{0}', space=vmem, size = 0x2000, scoped, tag = 'output window, operand 0']
    #allocation3 [shape = 's32[2]{0}', space=sflag, size = 0x8, scoped, tag = 'scoped memory for tpu_custom_call.1']
    #allocation4 [shape = 'u8[8192]{0}', space=vmem, size = 0x2000, scoped, tag = 'output window, operand 1']
    #allocation5 [shape = 's32[2]{0}', space=sflag, size = 0x8, scoped, tag = 'scoped memory for tpu_custom_call.1']
    %14 = vsyncpa [#allocation3], 0
    %s15 = scalar_lea.sflag [#allocation3], 1
    %16 = vsyncpa %s15, 0
    %17 = vsyncpa [#allocation5], 0
    %s18 = scalar_lea.sflag [#allocation5], 1
    %19 = vsyncpa %s18, 0
    loop: start=0, step=1, limit=5
    $region2: #{tpu_custom_call.1} parent=1 // loop_pre_header
      _
    $region3: #{tpu_custom_call.1} parent=1 // loop_header
      %s21 = sphi 0, %s25
      %p22 = scmp.ge.s32.totalorder %s21, 5
      %s31 = sphi 0, %s33
      %s34 = sphi 0, %s31
      %s35 = sphi 0, %s34
      %s51 = sphi 0, %s35
      %s57 = sphi 0, %s59
      %s60 = sphi 0, %s57
      %s61 = sphi 0, %s60
      %s77 = sphi 0, %s61
      %s81 = sphi 0, %s81
      %s83 = sphi 0, %s81
      %s84 = sphi 0, %s83
      %s98 = sphi 0, %s84
      %s102 = sphi 0, %s102
      %s104 = sphi 0, %s102
      %s105 = sphi 0, %s104
      %s119 = sphi 0, %s105
      %s123 = sphi 0, %s123
      %s125 = sphi 0, %s123
      %s126 = sphi 0, %s125
      %s140 = sphi 0, %s126
      %s144 = sphi 0, %s144
      %s146 = sphi 0, %s144
      %s147 = sphi 0, %s146
      %s161 = sphi 0, %s147
      %s165 = sphi 0, %s165
      %s167 = sphi 0, %s165
      %s168 = sphi 0, %s167
      %s182 = sphi 0, %s168
      %s188 = sphi 0, %s190
      %s191 = sphi 0, %s188
      %s192 = sphi 0, %s191
      %s208 = sphi 0, %s192
      %s214 = sphi 0, %s216
      %s217 = sphi 0, %s214
      %s218 = sphi 0, %s217
      %s234 = sphi 0, %s218
    $region4: #{tpu_custom_call.1} parent=1 // loop_header_branch
      %24 = sbr.rel (%p22) target = $region8
    $region5: #{tpu_custom_call.1} parent=1 // loop_body
      %s26 = ssub.s32 %s21, 1
      %s27 = ssub.s32 %s21, 2
      %s28 = sadd.s32 %s21, 1
      %s29 = ssub.s32 %s21, %s28
      %p30 = scmp.eq.s32.totalorder %s29, 0
      %s32 = sadd.s32 %s31, 1
      %s33 = scalar_select %p30, %s31, %s32
      %p36 = pneg %p30
      %p37 = scmp.eq.s32.totalorder %s21, 2
      %p38 = por %p36, %p37
      %p39 = scmp.ne.s32.totalorder %s31, %s34
      %p40 = scmp.eq.s32.totalorder %s21, 0
      %p41 = por %p39, %p40
      %p42 = scmp.ne.s32.totalorder %s31, %s34
      %p43 = scmp.eq.s32.totalorder %s26, 2
      %p44 = por %p42, %p43
      %p45 = scmp.ne.s32.totalorder %s34, %s35
      %p46 = scmp.eq.s32.totalorder %s26, 0
      %p47 = por %p45, %p46
      %p48 = scmp.ne.s32.totalorder %s34, %s35
      %p49 = scmp.eq.s32.totalorder %s27, 2
      %p50 = por %p48, %p49
      %p52 = scmp.ne.s32.totalorder %s35, %s51
      %p53 = scmp.eq.s32.totalorder %s27, 0
      %p54 = por %p52, %p53
      %s55 = ssub.s32 %s21, %s28
      %p56 = scmp.eq.s32.totalorder %s55, 0
      %s58 = sadd.s32 %s57, 1
      %s59 = scalar_select %p56, %s57, %s58
      %p62 = pneg %p56
      %p63 = scmp.eq.s32.totalorder %s21, 2
      %p64 = por %p62, %p63
      %p65 = scmp.ne.s32.totalorder %s57, %s60
      %p66 = scmp.eq.s32.totalorder %s21, 0
      %p67 = por %p65, %p66
      %p68 = scmp.ne.s32.totalorder %s57, %s60
      %p69 = scmp.eq.s32.totalorder %s26, 2
      %p70 = por %p68, %p69
      %p71 = scmp.ne.s32.totalorder %s60, %s61
      %p72 = scmp.eq.s32.totalorder %s26, 0
      %p73 = por %p71, %p72
      %p74 = scmp.ne.s32.totalorder %s60, %s61
      %p75 = scmp.eq.s32.totalorder %s27, 2
      %p76 = por %p74, %p75
      %p78 = scmp.ne.s32.totalorder %s61, %s77
      %p79 = scmp.eq.s32.totalorder %s27, 0
      %p80 = por %p78, %p79
      %s82 = sadd.s32 %s81, 1
      %p85 = scmp.eq.s32.totalorder %s21, 2
      %p86 = scmp.ne.s32.totalorder %s81, %s83
      %p87 = scmp.eq.s32.totalorder %s21, 0
      %p88 = por %p86, %p87
      %p89 = scmp.ne.s32.totalorder %s81, %s83
      %p90 = scmp.eq.s32.totalorder %s26, 2
      %p91 = por %p89, %p90
      %p92 = scmp.ne.s32.totalorder %s83, %s84
      %p93 = scmp.eq.s32.totalorder %s26, 0
      %p94 = por %p92, %p93
      %p95 = scmp.ne.s32.totalorder %s83, %s84
      %p96 = scmp.eq.s32.totalorder %s27, 2
      %p97 = por %p95, %p96
      %p99 = scmp.ne.s32.totalorder %s84, %s98
      %p100 = scmp.eq.s32.totalorder %s27, 0
      %p101 = por %p99, %p100
      %s103 = sadd.s32 %s102, 1
      %p106 = scmp.eq.s32.totalorder %s21, 2
      %p107 = scmp.ne.s32.totalorder %s102, %s104
      %p108 = scmp.eq.s32.totalorder %s21, 0
      %p109 = por %p107, %p108
      %p110 = scmp.ne.s32.totalorder %s102, %s104
      %p111 = scmp.eq.s32.totalorder %s26, 2
      %p112 = por %p110, %p111
      %p113 = scmp.ne.s32.totalorder %s104, %s105
      %p114 = scmp.eq.s32.totalorder %s26, 0
      %p115 = por %p113, %p114
      %p116 = scmp.ne.s32.totalorder %s104, %s105
      %p117 = scmp.eq.s32.totalorder %s27, 2
      %p118 = por %p116, %p117
      %p120 = scmp.ne.s32.totalorder %s105, %s119
      %p121 = scmp.eq.s32.totalorder %s27, 0
      %p122 = por %p120, %p121
      %s124 = sadd.s32 %s123, 1
      %p127 = scmp.eq.s32.totalorder %s21, 2
      %p128 = scmp.ne.s32.totalorder %s123, %s125
      %p129 = scmp.eq.s32.totalorder %s21, 0
      %p130 = por %p128, %p129
      %p131 = scmp.ne.s32.totalorder %s123, %s125
      %p132 = scmp.eq.s32.totalorder %s26, 2
      %p133 = por %p131, %p132
      %p134 = scmp.ne.s32.totalorder %s125, %s126
      %p135 = scmp.eq.s32.totalorder %s26, 0
      %p136 = por %p134, %p135
      %p137 = scmp.ne.s32.totalorder %s125, %s126
      %p138 = scmp.eq.s32.totalorder %s27, 2
      %p139 = por %p137, %p138
      %p141 = scmp.ne.s32.totalorder %s126, %s140
      %p142 = scmp.eq.s32.totalorder %s27, 0
      %p143 = por %p141, %p142
      %s145 = sadd.s32 %s144, 1
      %p148 = scmp.eq.s32.totalorder %s21, 2
      %p149 = scmp.ne.s32.totalorder %s144, %s146
      %p150 = scmp.eq.s32.totalorder %s21, 0
      %p151 = por %p149, %p150
      %p152 = scmp.ne.s32.totalorder %s144, %s146
      %p153 = scmp.eq.s32.totalorder %s26, 2
      %p154 = por %p152, %p153
      %p155 = scmp.ne.s32.totalorder %s146, %s147
      %p156 = scmp.eq.s32.totalorder %s26, 0
      %p157 = por %p155, %p156
      %p158 = scmp.ne.s32.totalorder %s146, %s147
      %p159 = scmp.eq.s32.totalorder %s27, 2
      %p160 = por %p158, %p159
      %p162 = scmp.ne.s32.totalorder %s147, %s161
      %p163 = scmp.eq.s32.totalorder %s27, 0
      %p164 = por %p162, %p163
      %s166 = sadd.s32 %s165, 1
      %p169 = scmp.eq.s32.totalorder %s21, 2
      %p170 = scmp.ne.s32.totalorder %s165, %s167
      %p171 = scmp.eq.s32.totalorder %s21, 0
      %p172 = por %p170, %p171
      %p173 = scmp.ne.s32.totalorder %s165, %s167
      %p174 = scmp.eq.s32.totalorder %s26, 2
      %p175 = por %p173, %p174
      %p176 = scmp.ne.s32.totalorder %s167, %s168
      %p177 = scmp.eq.s32.totalorder %s26, 0
      %p178 = por %p176, %p177
      %p179 = scmp.ne.s32.totalorder %s167, %s168
      %p180 = scmp.eq.s32.totalorder %s27, 2
      %p181 = por %p179, %p180
      %p183 = scmp.ne.s32.totalorder %s168, %s182
      %p184 = scmp.eq.s32.totalorder %s27, 0
      %p185 = por %p183, %p184
      %s186 = ssub.s32 %s21, %s28
      %p187 = scmp.eq.s32.totalorder %s186, 0
      %s189 = sadd.s32 %s188, 1
      %s190 = scalar_select %p187, %s188, %s189
      %p193 = pneg %p187
      %p194 = scmp.eq.s32.totalorder %s21, 2
      %p195 = por %p193, %p194
      %p196 = scmp.ne.s32.totalorder %s188, %s191
      %p197 = scmp.eq.s32.totalorder %s21, 0
      %p198 = por %p196, %p197
      %p199 = scmp.ne.s32.totalorder %s188, %s191
      %p200 = scmp.eq.s32.totalorder %s26, 2
      %p201 = por %p199, %p200
      %p202 = scmp.ne.s32.totalorder %s191, %s192
      %p203 = scmp.eq.s32.totalorder %s26, 0
      %p204 = por %p202, %p203
      %p205 = scmp.ne.s32.totalorder %s191, %s192
      %p206 = scmp.eq.s32.totalorder %s27, 2
      %p207 = por %p205, %p206
      %p209 = scmp.ne.s32.totalorder %s192, %s208
      %p210 = scmp.eq.s32.totalorder %s27, 0
      %p211 = por %p209, %p210
      %s212 = ssub.s32 %s21, %s28
      %p213 = scmp.eq.s32.totalorder %s212, 0
      %s215 = sadd.s32 %s214, 1
      %s216 = scalar_select %p213, %s214, %s215
      %p219 = pneg %p213
      %p220 = scmp.eq.s32.totalorder %s21, 2
      %p221 = por %p219, %p220
      %p222 = scmp.ne.s32.totalorder %s214, %s217
      %p223 = scmp.eq.s32.totalorder %s21, 0
      %p224 = por %p222, %p223
      %p225 = scmp.ne.s32.totalorder %s214, %s217
      %p226 = scmp.eq.s32.totalorder %s26, 2
      %p227 = por %p225, %p226
      %p228 = scmp.ne.s32.totalorder %s217, %s218
      %p229 = scmp.eq.s32.totalorder %s26, 0
      %p230 = por %p228, %p229
      %p231 = scmp.ne.s32.totalorder %s217, %s218
      %p232 = scmp.eq.s32.totalorder %s27, 2
      %p233 = por %p231, %p232
      %p235 = scmp.ne.s32.totalorder %s218, %s234
      %p236 = scmp.eq.s32.totalorder %s27, 0
      %p237 = por %p235, %p236
      %p238 = scmp.le.s32.totalorder 1, %s21
      %p239 = scmp.lt.s32.totalorder %s21, 4
      %p240 = pnand %p238, %p239
      %p241 = pneg %p240
      // Predicated region
      $region9: #{tpu_custom_call.1} parent=5 // pred_check
        _
      $region10: #{tpu_custom_call.1} parent=5 // pred_check_branch
        %243 = sbr.rel (%p240) target = $region12
      $region11: #{tpu_custom_call.1} parent=5 // pred_region
        %s244 = ssub.s32 %s21, 1
        // Predicated region
        $region13: #{tpu_custom_call.1} parent=11 // pred_check
          %p245 = pneg %p94
        $region14: #{tpu_custom_call.1} parent=11 // pred_check_branch
          %247 = sbr.rel (%p245) target = $region16
        $region15: #{tpu_custom_call.1} parent=11 // pred_region
          _
        $region16: #{tpu_custom_call.1} parent=11 // pred_fallthru
          _
        // Predicated region
        $region17: #{tpu_custom_call.1} parent=11 // pred_check
          %p248 = pneg %p115
        $region18: #{tpu_custom_call.1} parent=11 // pred_check_branch
          %250 = sbr.rel (%p248) target = $region20
        $region19: #{tpu_custom_call.1} parent=11 // pred_region
          _
        $region20: #{tpu_custom_call.1} parent=11 // pred_fallthru
          _
        // Predicated region
        $region21: #{tpu_custom_call.1} parent=11 // pred_check
          %p251 = pneg %p136
        $region22: #{tpu_custom_call.1} parent=11 // pred_check_branch
          %253 = sbr.rel (%p251) target = $region24
        $region23: #{tpu_custom_call.1} parent=11 // pred_region
          _
        $region24: #{tpu_custom_call.1} parent=11 // pred_fallthru
          _
        // Predicated region
        $region25: #{tpu_custom_call.1} parent=11 // pred_check
          %p254 = pneg %p157
        $region26: #{tpu_custom_call.1} parent=11 // pred_check_branch
          %256 = sbr.rel (%p254) target = $region28
        $region27: #{tpu_custom_call.1} parent=11 // pred_region
          _
        $region28: #{tpu_custom_call.1} parent=11 // pred_fallthru
          _
        // Predicated region
        $region29: #{tpu_custom_call.1} parent=11 // pred_check
          %p257 = pneg %p178
        $region30: #{tpu_custom_call.1} parent=11 // pred_check_branch
          %259 = sbr.rel (%p257) target = $region32
        $region31: #{tpu_custom_call.1} parent=11 // pred_region
          _
        $region32: #{tpu_custom_call.1} parent=11 // pred_fallthru
          _
      $region12: #{tpu_custom_call.1} parent=5 // pred_fallthru
        _
      %p260 = scmp.lt.s32.totalorder %s21, 3
      // Predicated region
      $region33: #{tpu_custom_call.1} parent=5 // pred_check
        %p261 = pneg %p260
      $region34: #{tpu_custom_call.1} parent=5 // pred_check_branch
        %263 = sbr.rel (%p261) target = $region36
      $region35: #{tpu_custom_call.1} parent=5 // pred_region
        // Predicated region
        $region37: #{tpu_custom_call.1} parent=35 // pred_check
          %p264 = pneg %p41
        $region38: #{tpu_custom_call.1} parent=35 // pred_check_branch
          %266 = sbr.rel (%p264) target = $region40
        $region39: #{tpu_custom_call.1} parent=35 // pred_region
          %p267 = scmp.lt.s32.totalorder %s21, 2
          %s268 = scalar_select %p267, %s21, 2
          %s269 = smul.addr %s268, 8
          %s270 = scalar_lea.vmem %s0, %s269
        $region40: #{tpu_custom_call.1} parent=35 // pred_fallthru
          _
        // Predicated region
        $region41: #{tpu_custom_call.1} parent=35 // pred_check
          %p271 = pneg %p67
        $region42: #{tpu_custom_call.1} parent=35 // pred_check_branch
          %273 = sbr.rel (%p271) target = $region44
        $region43: #{tpu_custom_call.1} parent=35 // pred_region
          %p274 = scmp.lt.s32.totalorder %s21, 2
          %s275 = scalar_select %p274, %s21, 2
          %s276 = smul.addr %s275, 8
          %s277 = scalar_lea.vmem %s1, %s276
        $region44: #{tpu_custom_call.1} parent=35 // pred_fallthru
          _
      $region36: #{tpu_custom_call.1} parent=5 // pred_fallthru
        _
      %p278 = scmp.le.s32.totalorder 1, %s21
      %p279 = scmp.lt.s32.totalorder %s21, 4
      %p280 = pnand %p278, %p279
      %p281 = pneg %p280
      // Predicated region
      $region45: #{tpu_custom_call.1} parent=5 // pred_check
        _
      $region46: #{tpu_custom_call.1} parent=5 // pred_check_branch
        %283 = sbr.rel (%p280) target = $region48
      $region47: #{tpu_custom_call.1} parent=5 // pred_region
        %s284 = ssub.s32 %s21, 1
        %p285 = scmp.lt.s32.totalorder %s26, 2
        %s286 = scalar_select %p285, %s26, 2
        %s287 = smul.addr %s286, 8
        %s288 = scalar_lea.vmem %s0, %s287
        %p289 = pneg %p47
        %p290 = pneg %p44
        %p291 = scmp.lt.s32.totalorder %s26, 2
        %s292 = scalar_select %p291, %s26, 2
        %s293 = smul.addr %s292, 8
        %s294 = scalar_lea.vmem %s1, %s293
        %p295 = pneg %p73
        %p296 = pneg %p70
        %p297 = pneg %p94
        %p298 = pneg %p91
        %p299 = pneg %p115
        %p300 = pneg %p112
        %p301 = pneg %p136
        %p302 = pneg %p133
        %p303 = pneg %p157
        %p304 = pneg %p154
        %p305 = pneg %p178
        %p306 = pneg %p175
        %p307 = pneg %p204
        %p308 = pneg %p201
        %s309 = sand.u32 %s191, 1
        %s310 = scalar_lea.sflag [#allocation3], %s309
        %s311 = sand.u32 %s191, 1
        %s312 = smul.addr %s311, 8
        %s313 = scalar_lea.vmem [#allocation2], %s312
        %p314 = pneg %p230
        %p315 = pneg %p227
        %s316 = sand.u32 %s217, 1
        %s317 = scalar_lea.sflag [#allocation5], %s316
        %s318 = sand.u32 %s217, 1
        %s319 = smul.addr %s318, 8
        %s320 = scalar_lea.vmem [#allocation4], %s319
        %p321 = scmp.lt.s32.totalorder %s26, 2
        %s322 = scalar_select %p321, %s26, 2
        %s323 = smul.addr %s322, 8
        %s324 = scalar_lea.vmem %s0, %s323
        %p325 = scmp.lt.s32.totalorder %s26, 2
        %s326 = scalar_select %p325, %s26, 2
        %s327 = smul.addr %s326, 8
        %s328 = scalar_lea.vmem %s1, %s327
        %v330 = vld [vmem:[%s324] sm:$0xff]
        %v331 = vpack.c.bf16 %v330, %v330
        %v332 = vld [vmem:[%s328] sm:$0xff]
        %v333 = vpack.c.bf16 %v332, %v332
        %v334 = vld [vmem:[%s2] sm:$0xf]
        %v335 = vld [vmem:[%s2 + $0x4] sm:$0xf]
        %v336 = vld [vmem:[%s3] sm:$0xf]
        %vm337 = vcmask 64512
        %v339 = vsel %vm337, %v333, 0
        %vm341 = vcmask 1043456
        %v343 = vsel %vm341, %v336, 0
        %345 = vmatprep.subr.bf16.mxu0 0
        %346 = vmatpush1.bf16.msra.mxu0 %v343
        %347 = vmatprep.subr.bf16.mxu0 0
        %348 = vmatpush1.bf16.msra.mxu0 0
        %349 = vmatprep.subr.bf16.mxu0 0
        %350 = vmatpush1.bf16.msra.mxu0 0
        %351 = vmatprep.subr.bf16.mxu0 0
        %352 = vmatpush1.bf16.msra.mxu0 0
        %353 = vmatprep.subr.bf16.mxu0 0
        %354 = vmatpush1.bf16.msra.mxu0 0
        %355 = vmatprep.subr.bf16.mxu0 0
        %356 = vmatpush1.bf16.msra.mxu0 0
        %357 = vmatprep.subr.bf16.mxu0 0
        %358 = vmatpush1.bf16.msra.mxu0 0
        %359 = vmatprep.subr.bf16.mxu0 0
        %360 = vmatpush1.bf16.msra.mxu0 0
        %361 = vmatprep.subr.bf16.mxu0 0
        %362 = vmatpush1.bf16.msra.mxu0 0
        %363 = vmatprep.subr.bf16.mxu0 0
        %364 = vmatpush1.bf16.msra.mxu0 0
        %365 = vmatprep.subr.bf16.mxu0 0
        %366 = vmatpush1.bf16.msra.mxu0 0
        %367 = vmatprep.subr.bf16.mxu0 0
        %368 = vmatpush1.bf16.msra.mxu0 0
        %369 = vmatprep.subr.bf16.mxu0 0
        %370 = vmatpush1.bf16.msra.mxu0 0
        %371 = vmatprep.subr.bf16.mxu0 0
        %372 = vmatpush1.bf16.msra.mxu0 0
        %373 = vmatprep.subr.bf16.mxu0 0
        %374 = vmatpush1.bf16.msra.mxu0 0
        %375 = vmatprep.subr.bf16.mxu0 0
        %376 = vmatpush1.bf16.msra.mxu0 0
        %377 = vmatprep.mubr.bf16.mxu0 0
        %378 = vmatmul.mubr.bf16.gmra.mrb[0].mxu0 %v339
        %v379 = vpop.f32.mrb[0].mxu0
        %v380 = vadd.f32 0.0, %v379
        %v381 = vpop.f32.mrb[0].mxu0
        %v382 = vpop.f32.mrb[0].mxu0
        %v383 = vpop.f32.mrb[0].mxu0
        %384 = vdwg.mxu0
        %v387 = vunpack.c.l.b16 %v334
        %v388 = vunpack.c.l.b16 %v335
        %v389 = vpack.c.b16 %v388, %v387
        %vm391 = vcmask 130048
        %v393 = vsel %vm391, %v331, 0
        %395 = vmatprep.subr.bf16.mxu0 0
        %396 = vmatpush1.bf16.msra.mxu0 %v389
        %397 = vmatprep.subr.bf16.mxu0 0
        %398 = vmatpush1.bf16.msra.mxu0 0
        %399 = vmatprep.subr.bf16.mxu0 0
        %400 = vmatpush1.bf16.msra.mxu0 0
        %401 = vmatprep.subr.bf16.mxu0 0
        %402 = vmatpush1.bf16.msra.mxu0 0
        %403 = vmatprep.subr.bf16.mxu0 0
        %404 = vmatpush1.bf16.msra.mxu0 0
        %405 = vmatprep.subr.bf16.mxu0 0
        %406 = vmatpush1.bf16.msra.mxu0 0
        %407 = vmatprep.subr.bf16.mxu0 0
        %408 = vmatpush1.bf16.msra.mxu0 0
        %409 = vmatprep.subr.bf16.mxu0 0
        %410 = vmatpush1.bf16.msra.mxu0 0
        %411 = vmatprep.subr.bf16.mxu0 0
        %412 = vmatpush1.bf16.msra.mxu0 0
        %413 = vmatprep.subr.bf16.mxu0 0
        %414 = vmatpush1.bf16.msra.mxu0 0
        %415 = vmatprep.subr.bf16.mxu0 0
        %416 = vmatpush1.bf16.msra.mxu0 0
        %417 = vmatprep.subr.bf16.mxu0 0
        %418 = vmatpush1.bf16.msra.mxu0 0
        %419 = vmatprep.subr.bf16.mxu0 0
        %420 = vmatpush1.bf16.msra.mxu0 0
        %421 = vmatprep.subr.bf16.mxu0 0
        %422 = vmatpush1.bf16.msra.mxu0 0
        %423 = vmatprep.subr.bf16.mxu0 0
        %424 = vmatpush1.bf16.msra.mxu0 0
        %425 = vmatprep.subr.bf16.mxu0 0
        %426 = vmatpush1.bf16.msra.mxu0 0
        %427 = vmatprep.mubr.bf16.mxu0 0
        %428 = vmatmul.mubr.bf16.gmra.mrb[0].mxu0 %v393
        %v429 = vpop.f32.mrb[0].mxu0
        %v430 = vadd.f32 %v380, %v429
        %v431 = vpop.f32.mrb[0].mxu0
        %v432 = vpop.f32.mrb[0].mxu0
        %v433 = vpop.f32.mrb[0].mxu0
        %434 = vdwg.mxu0
        %v435 = vld [vmem:[%s4] sm:$0x1]
        %v437 = vlaneseq
        %v438 = vshrl.u32 %v437, 7
        %v439 = vsub.s32 0, %v438
        %v440 = vrot.slane %v435, %v439
        %v442 = vadd.f32 %v430, %v440
        %v443 = vmul.f32 %v442, 0.2
        %v444 = vmax.f32 %v442, %v443
        %v445 = vpack.c.bf16 %v444, %v444
        %v446 = vld [vmem:[%s5] sm:$0xf]
        %v447 = vld [vmem:[%s5 + $0x4] sm:$0xf]
        %v448 = vld [vmem:[%s5 + $0x8] sm:$0xf]
        %v449 = vld [vmem:[%s5 + $0xc] sm:$0xf]
        %v450 = vld [vmem:[%s5 + $0x10] sm:$0xf]
        %v451 = vld [vmem:[%s5 + $0x14] sm:$0xf]
        %v452 = vld [vmem:[%s5 + $0x18] sm:$0xf]
        %v453 = vld [vmem:[%s5 + $0x1c] sm:$0xf]
        %v454 = vld [vmem:[%s5 + $0x20] sm:$0xf]
        %v455 = vld [vmem:[%s5 + $0x24] sm:$0xf]
        %v456 = vld [vmem:[%s5 + $0x28] sm:$0xf]
        %v457 = vld [vmem:[%s5 + $0x2c] sm:$0xf]
        %v458 = vld [vmem:[%s5 + $0x30] sm:$0xf]
        %v459 = vld [vmem:[%s5 + $0x34] sm:$0xf]
        %v460 = vld [vmem:[%s5 + $0x38] sm:$0xf]
        %v461 = vld [vmem:[%s5 + $0x3c] sm:$0xf]
        %v462 = vld [vmem:[%s6] sm:$0x1]
        %v464 = vlaneseq
        %v465 = vshrl.u32 %v464, 7
        %v466 = vsub.s32 0, %v465
        %v467 = vrot.slane %v462, %v466
        %v485 = vunpack.c.l.b16 %v446
        %v486 = vunpack.c.l.b16 %v447
        %v487 = vunpack.c.l.b16 %v448
        %v488 = vunpack.c.l.b16 %v449
        %v489 = vunpack.c.l.b16 %v450
        %v490 = vunpack.c.l.b16 %v451
        %v491 = vunpack.c.l.b16 %v452
        %v492 = vunpack.c.l.b16 %v453
        %v493 = vunpack.c.l.b16 %v454
        %v494 = vunpack.c.l.b16 %v455
        %v495 = vunpack.c.l.b16 %v456
        %v496 = vunpack.c.l.b16 %v457
        %v497 = vunpack.c.l.b16 %v458
        %v498 = vunpack.c.l.b16 %v459
        %v499 = vunpack.c.l.b16 %v460
        %v500 = vunpack.c.l.b16 %v461
        %v501 = vpack.c.b16 %v486, %v485
        %v502 = vpack.c.b16 %v488, %v487
        %v503 = vpack.c.b16 %v490, %v489
        %v504 = vpack.c.b16 %v492, %v491
        %v505 = vpack.c.b16 %v494, %v493
        %v506 = vpack.c.b16 %v496, %v495
        %v507 = vpack.c.b16 %v498, %v497
        %v508 = vpack.c.b16 %v500, %v499
        %517 = vmatprep.subr.bf16.mxu0 0
        %518 = vmatpush1.bf16.msra.mxu0 %v501
        %519 = vmatprep.subr.bf16.mxu0 0
        %520 = vmatpush1.bf16.msra.mxu0 %v502
        %521 = vmatprep.subr.bf16.mxu0 0
        %522 = vmatpush1.bf16.msra.mxu0 %v503
        %523 = vmatprep.subr.bf16.mxu0 0
        %524 = vmatpush1.bf16.msra.mxu0 %v504
        %525 = vmatprep.subr.bf16.mxu0 0
        %526 = vmatpush1.bf16.msra.mxu0 %v505
        %527 = vmatprep.subr.bf16.mxu0 0
        %528 = vmatpush1.bf16.msra.mxu0 %v506
        %529 = vmatprep.subr.bf16.mxu0 0
        %530 = vmatpush1.bf16.msra.mxu0 %v507
        %531 = vmatprep.subr.bf16.mxu0 0
        %532 = vmatpush1.bf16.msra.mxu0 %v508
        %533 = vmatprep.subr.bf16.mxu0 0
        %534 = vmatpush1.bf16.msra.mxu0 0
        %535 = vmatprep.subr.bf16.mxu0 0
        %536 = vmatpush1.bf16.msra.mxu0 0
        %537 = vmatprep.subr.bf16.mxu0 0
        %538 = vmatpush1.bf16.msra.mxu0 0
        %539 = vmatprep.subr.bf16.mxu0 0
        %540 = vmatpush1.bf16.msra.mxu0 0
        %541 = vmatprep.subr.bf16.mxu0 0
        %542 = vmatpush1.bf16.msra.mxu0 0
        %543 = vmatprep.subr.bf16.mxu0 0
        %544 = vmatpush1.bf16.msra.mxu0 0
        %545 = vmatprep.subr.bf16.mxu0 0
        %546 = vmatpush1.bf16.msra.mxu0 0
        %547 = vmatprep.subr.bf16.mxu0 0
        %548 = vmatpush1.bf16.msra.mxu0 0
        %549 = vmatprep.mubr.bf16.mxu0 0
        %550 = vmatmul.mubr.bf16.gmra.mrb[0].mxu0 %v445
        %v551 = vpop.f32.mrb[0].mxu0
        %v552 = vadd.f32 %v467, %v551
        %v553 = vpop.f32.mrb[0].mxu0
        %v554 = vpop.f32.mrb[0].mxu0
        %v555 = vpop.f32.mrb[0].mxu0
        %556 = vdwg.mxu0
        %558 = vset.pattern.permute.xlu0 10
        %559 = vperm.xlu0 %558, %v552
        %v560 = vpop.permute.xlu0 %559
        %562 = vst [vmem:[%s313] sm:$0xff] %v560
        %v563 = vlaneseq
        %v564 = vand.u32 %v563, 127
        %vm565 = vcmp.lt.s32.totalorder %v564, 10
        %v566 = vsel %vm565, %v552, -1e+30
        %567 = vmax.xlane.f32.xlu0 %v566
        %v568 = vpop.xlane.xlu0 %567
        %v569 = vsub.f32 %v566, %v568
        %v570 = vmul.f32 %v569, 1.442695
        %v571 = vpow.pop %v570
        %572 = vadd.xlane.f32.xlu0 %v571
        %v573 = vpop.xlane.xlu0 %572
        %v574 = vlog2.pop %v573
        %v575 = vmul.f32 %v574, 0.6931472
        %v576 = vadd.f32 %v568, %v575
        %v577 = vsub.f32 %v566, %v576
        %578 = vst [vmem:[%s320] sm:$0xff] %v577
        %s579 = sand.u32 %s191, 1
        %s580 = scalar_lea.sflag [#allocation3], %s579
        %s581 = sand.u32 %s191, 1
        %s582 = smul.addr %s581, 8
        %s583 = scalar_lea.vmem [#allocation2], %s582
        %s584 = sand.u32 %s217, 1
        %s585 = scalar_lea.sflag [#allocation5], %s584
        %s586 = sand.u32 %s217, 1
        %s587 = smul.addr %s586, 8
        %s588 = scalar_lea.vmem [#allocation4], %s587
        // Predicated region
        $region49: #{tpu_custom_call.1} parent=47 // pred_check
          %p589 = pneg %p201
        $region50: #{tpu_custom_call.1} parent=47 // pred_check_branch
          %591 = sbr.rel (%p589) target = $region52
        $region51: #{tpu_custom_call.1} parent=47 // pred_region
          %s593 = ssub.s32 128, 128
          %594 = vsyncadd %s580, %s593
          %s595 = smul.addr %s26, 128
          %s596 = scalar_lea.hbm %s7, %s595
          %s598 = sshll.u32 %s583, 4
          %s599 = int_to_ptr.vmem [resolvable:$true] %s598
          %601 = dma.vmem_to_hbm [thread:$0]  %s599, 128, %s596, %s580
        $region52: #{tpu_custom_call.1} parent=47 // pred_fallthru
          _
        // Predicated region
        $region53: #{tpu_custom_call.1} parent=47 // pred_check
          %p602 = pneg %p227
        $region54: #{tpu_custom_call.1} parent=47 // pred_check_branch
          %604 = sbr.rel (%p602) target = $region56
        $region55: #{tpu_custom_call.1} parent=47 // pred_region
          %s606 = ssub.s32 128, 128
          %607 = vsyncadd %s585, %s606
          %s608 = smul.addr %s26, 128
          %s609 = scalar_lea.hbm %s8, %s608
          %s611 = sshll.u32 %s588, 4
          %s612 = int_to_ptr.vmem [resolvable:$true] %s611
          %614 = dma.vmem_to_hbm [thread:$0]  %s612, 128, %s609, %s585
        $region56: #{tpu_custom_call.1} parent=47 // pred_fallthru
          _
      $region48: #{tpu_custom_call.1} parent=5 // pred_fallthru
        _
      %p615 = scmp.le.s32.totalorder 2, %s21
      // Predicated region
      $region57: #{tpu_custom_call.1} parent=5 // pred_check
        %p616 = pneg %p615
      $region58: #{tpu_custom_call.1} parent=5 // pred_check_branch
        %618 = sbr.rel (%p616) target = $region60
      $region59: #{tpu_custom_call.1} parent=5 // pred_region
        %s619 = ssub.s32 %s21, 2
        // Predicated region
        $region61: #{tpu_custom_call.1} parent=59 // pred_check
          %p620 = pneg %p207
        $region62: #{tpu_custom_call.1} parent=59 // pred_check_branch
          %622 = sbr.rel (%p620) target = $region64
        $region63: #{tpu_custom_call.1} parent=59 // pred_region
          %s623 = sand.u32 %s192, 1
          %s624 = scalar_lea.sflag [#allocation3], %s623
          %s625 = sand.u32 %s192, 1
          %s626 = smul.addr %s625, 8
          %s627 = scalar_lea.vmem [#allocation2], %s626
          %628 = dma.done %s624, 128
        $region64: #{tpu_custom_call.1} parent=59 // pred_fallthru
          _
        // Predicated region
        $region65: #{tpu_custom_call.1} parent=59 // pred_check
          %p629 = pneg %p233
        $region66: #{tpu_custom_call.1} parent=59 // pred_check_branch
          %631 = sbr.rel (%p629) target = $region68
        $region67: #{tpu_custom_call.1} parent=59 // pred_region
          %s632 = sand.u32 %s218, 1
          %s633 = scalar_lea.sflag [#allocation5], %s632
          %s634 = sand.u32 %s218, 1
          %s635 = smul.addr %s634, 8
          %s636 = scalar_lea.vmem [#allocation4], %s635
          %637 = dma.done %s633, 128
        $region68: #{tpu_custom_call.1} parent=59 // pred_fallthru
          _
      $region60: #{tpu_custom_call.1} parent=5 // pred_fallthru
        _
    $region6: #{tpu_custom_call.1} parent=1 // loop_footer
      %s25 = sadd.s32 1, %s21
    $region7: #{tpu_custom_call.1} parent=1 // loop_footer_branch
      %20 = sbr.rel target = $region3
    $region8: #{tpu_custom_call.1} parent=1 // loop_exit
      _
    %638 = vsyncpa [#allocation3], 1
    %s639 = scalar_lea.sflag [#allocation3], 1
    %640 = vsyncpa %s639, 1
    %641 = vsyncpa [#allocation5], 1
    %s642 = scalar_lea.sflag [#allocation5], 1
    %643 = vsyncpa %s642, 1

</llo_original>
